<compile_context>
chip_gen: v7x
topology: tpu7x:2x2x1
jax: 0.10.0
libtpu: 0.0.40
codegen_flags: <defaults>
</compile_context>

<pallas_src>
import functools

import jax
import jax.numpy as jnp
from jax.experimental import pallas as pl
from jax.experimental.pallas import tpu as pltpu


def _topk_mean_packed(x, k, unroll):
    """Mean of the k largest values along the last axis.

    x: (..., T) float32 with finite, non-negative entries (BCE probabilities),
    so the int32 bitcast preserves ordering.  Each step does ONE cross-lane max
    over a packed (truncated-value | reversed-column) key; keys are unique per
    row, so `packed == max` retires exactly one position per step.  Retired
    positions are marked with INT32_MIN, so the final selection mask is just
    `packed == INT32_MIN` (no extra loop-carried mask).
    """
    T = x.shape[-1]
    n_low = max((T - 1).bit_length(), 0)        # bits needed to encode a column
    keep = jnp.int32(~((1 << n_low) - 1))
    neg = jnp.int32(jnp.iinfo(jnp.int32).min)

    col = jax.lax.broadcasted_iota(jnp.int32, x.shape, x.ndim - 1)
    packed0 = (pltpu.bitcast(x, jnp.int32) & keep) | ((T - 1) - col)

    def body(_, packed):
        m = jnp.max(packed, axis=-1, keepdims=True)   # one XLU reduce / step
        return jnp.where(packed == m, neg, packed)    # keys unique per row

    packed = jax.lax.fori_loop(0, k, body, packed0, unroll=unroll)
    sel = (packed == neg).astype(jnp.float32)         # exactly k ones per row
    return jnp.sum(x * sel, axis=-1, keepdims=True) * (1.0 / float(k))


def _ur_loss_kernel(label_ref, att_ref, a_att_ref, n_att_ref, a_natt_ref,
                    n_aatt_ref, out_ref, *, k, batch, tile_b, ragged,
                    native_log, unroll):
    f32 = jnp.float32

    if ragged:
        row = jax.lax.broadcasted_iota(jnp.int32, (tile_b, 1), 0)
        valid = (pl.program_id(0) * tile_b + row) < batch
        masked = lambda v: jnp.where(valid, v, 0.0)
    else:
        masked = lambda v: v

    # ---- full-(tile_b, T) BCE partial sums first (buffers die before the
    #      top-k working set is built) -----------------------------------
    def neg_log_sum(p):
        # sum of -max(log(p), -100); log stays in the native dtype on chips
        # with a bf16 EUP (v6e/v7x), accumulation is f32.
        if not native_log:
            p = p.astype(f32)
        l = jnp.maximum(jnp.log(p), -100.0)           # nn.BCELoss log clamp
        return -jnp.sum(masked(l.astype(f32)))

    n_loss_sum = neg_log_sum(n_att_ref[...])          # target == ones
    a_nloss_sum = neg_log_sum(1.0 - a_natt_ref[...])  # target == zeros

    # ---- one shared top-k over the three selection problems -------------
    att = att_ref[...].astype(f32)
    a_att = a_att_ref[...].astype(f32)
    p_aatt = 1.0 - n_aatt_ref[...].astype(f32)
    if tile_b % 8 == 0:
        # Sublane-aligned collapse: one (3*tile_b, T) loop instead of three
        # sublane-padded (tile_b, T) ones.
        stacked = jnp.concatenate([att, p_aatt, a_att], axis=0)
        tkm = _topk_mean_packed(stacked, k, unroll)    # (3*tile_b, 1)
        anomaly = tkm[:tile_b]
        panomaly = tkm[tile_b:2 * tile_b]
        a_top = tkm[2 * tile_b:]
    else:
        # Tiny / unaligned tile: unaligned sublane concat is not portable on
        # Mosaic, keep the 3-major stack (still a single selection loop).
        stacked = jnp.stack([att, p_aatt, a_att], axis=0)   # (3, tile_b, T)
        tkm = _topk_mean_packed(stacked, k, unroll)          # (3, tile_b, 1)
        anomaly, panomaly, a_top = tkm[0], tkm[1], tkm[2]

    label = label_ref[...].astype(f32)                 # (tile_b, 1)
    logp = jnp.maximum(jnp.log(anomaly), -100.0)
    log1mp = jnp.maximum(jnp.log(1.0 - anomaly), -100.0)
    anom_sum = jnp.sum(masked(-(label * logp + (1.0 - label) * log1mp)))
    pan_sum = -jnp.sum(masked(jnp.maximum(jnp.log(panomaly), -100.0)))
    a_sum = -jnp.sum(masked(jnp.maximum(jnp.log(a_top), -100.0)))

    # ---- single lane-dense (1, 8, 128) partial-sum block ----------------
    lane = jax.lax.broadcasted_iota(jnp.int32, (1, 8, 128), 2)
    sub = jax.lax.broadcasted_iota(jnp.int32, (1, 8, 128), 1)
    r0 = sub == 0
    out_ref[...] = (jnp.where(r0 & (lane == 0), anom_sum, 0.0)
                    + jnp.where(r0 & (lane == 1), pan_sum, 0.0)
                    + jnp.where(r0 & (lane == 2), a_sum, 0.0)
                    + jnp.where(r0 & (lane == 3), n_loss_sum, 0.0)
                    + jnp.where(r0 & (lane == 4), a_nloss_sum, 0.0))


def _pick_tile_b(B, T, in_itemsize):
    """Rows per grid step: whole batch when small, else a multiple of 8 sized
    so the per-step working set stays well under every VMEM budget."""
    row_bytes = T * (5 * 2 * in_itemsize + 16 * 4)
    budget = 6 << 20
    if B < 8 or B * row_bytes <= budget:
        return B
    tb = (budget // row_bytes) // 8 * 8
    return int(max(8, min(B, tb)))


def ur_loss(result, label, step=0, tile_b=None):
    """Pallas implementation of UR_Loss.forward. Returns (cost, loss_dict)."""
    del step  # unused, kept for signature parity with the torch module

    # Inputs keep their native HBM dtype (bf16 stays bf16 -> half the DMA
    # bytes); any f32 upcast happens inside VMEM.
    att = result['frame']
    a_att = result['A_att']
    n_att = result['N_att']
    a_natt = result['A_Natt']
    n_aatt = result['N_Aatt']
    label = jnp.asarray(label, jnp.float32).reshape(-1, 1)

    B, T = att.shape
    k = T // 16 + 1
    in_itemsize = jnp.dtype(att.dtype).itemsize

    if tile_b is None:
        tile_b = _pick_tile_b(B, T, in_itemsize)
    tile_b = int(tile_b)
    if tile_b < B:
        tile_b = max(8, (tile_b + 7) // 8 * 8)   # sublane-aligned blocks
    tile_b = min(tile_b, B)
    num_tiles = pl.cdiv(B, tile_b)
    ragged = num_tiles * tile_b != B

    # bf16 EUP logs only where the hardware supports them (v6e / v7x); v5e has
    # no bf16 EUP/VPU, so it keeps the f32 path.
    kind = jax.devices()[0].device_kind.lower()
    native_log = (jnp.dtype(att.dtype) == jnp.dtype(jnp.bfloat16)
                  and any(t in kind for t in ('v6', 'v7', '7x')))

    unroll = k if k <= 8 else 4

    # Scoped VMEM sized to the real per-step working set: 5 double-buffered
    # native input blocks + ~16 f32-sized work buffers per (tile_b, T) slab +
    # slack; capped at 48 MiB (comfortably under v7x's 64 MiB per TC).
    work_bytes = tile_b * T * (5 * 2 * in_itemsize + 16 * 4)
    vmem_bytes = int(min(48 << 20, work_bytes + (4 << 20)))

    kernel = functools.partial(
        _ur_loss_kernel, k=k, batch=B, tile_b=tile_b, ragged=ragged,
        native_log=native_log, unroll=unroll)

    bt_spec = pl.BlockSpec((tile_b, T), lambda i: (i, 0))
    out = pl.pallas_call(
        kernel,
        out_shape=jax.ShapeDtypeStruct((num_tiles, 8, 128), jnp.float32),
        grid=(num_tiles,),
        in_specs=[pl.BlockSpec((tile_b, 1), lambda i: (i, 0)),   # label
                  bt_spec, bt_spec, bt_spec, bt_spec, bt_spec],
        out_specs=pl.BlockSpec((1, 8, 128), lambda i: (i, 0, 0)),
        compiler_params=pltpu.CompilerParams(
            dimension_semantics=("parallel",),
            vmem_limit_bytes=vmem_bytes),
    )(label, att, a_att, n_att, a_natt, n_aatt)

    # Tiny finalization on the per-tile partial sums (plain JAX).
    part = out.sum(axis=(0, 1))                    # (128,)
    anomaly_loss = part[0] / B
    panomaly_loss = part[1] / B
    a_loss = part[2] / B
    n_loss = part[3] / (B * T)
    a_nloss = part[4] / (B * T)

    triplet = jnp.asarray(result['triplet_margin'], jnp.float32).reshape(())
    kl_loss = jnp.asarray(result['kl_loss'], jnp.float32).reshape(())
    distance = jnp.asarray(result['distance'], jnp.float32).reshape(())

    cost = (anomaly_loss
            + 0.1 * (a_loss + panomaly_loss + n_loss + a_nloss)
            + 0.1 * triplet + 0.001 * kl_loss + 0.01 * distance)

    loss = {
        'total_loss': cost,
        'att_loss': anomaly_loss,
        'N_Aatt': panomaly_loss,
        'A_loss': a_loss,
        'N_loss': n_loss,
        'A_Nloss': a_nloss,
        'triplet': triplet,
        'kl_loss': kl_loss,
    }
    return cost, loss


# ---------------- plain-JAX reference (sanity check only) --------------------
def _ref_bce(p, y):
    logp = jnp.maximum(jnp.log(p), -100.0)
    log1mp = jnp.maximum(jnp.log(1.0 - p), -100.0)
    return jnp.mean(-(y * logp + (1.0 - y) * log1mp))


def _ref_ur_loss(result, label):
    f32 = jnp.float32
    att = result['frame'].astype(f32)
    a_att = result['A_att'].astype(f32)
    n_att = result['N_att'].astype(f32)
    a_natt = result['A_Natt'].astype(f32)
    n_aatt = result['N_Aatt'].astype(f32)
    label = jnp.asarray(label, f32).reshape(-1)
    T = att.shape[1]
    k = T // 16 + 1
    anomaly = jax.lax.top_k(att, k)[0].mean(-1)
    anomaly_loss = _ref_bce(anomaly, label)
    panomaly = jax.lax.top_k(1.0 - n_aatt, k)[0].mean(-1)
    panomaly_loss = _ref_bce(panomaly, jnp.ones_like(panomaly))
    a_top = jax.lax.top_k(a_att, k)[0].mean(-1)
    a_loss = _ref_bce(a_top, jnp.ones_like(a_top))
    n_loss = _ref_bce(n_att, jnp.ones_like(n_att))
    a_nloss = _ref_bce(a_natt, jnp.zeros_like(a_natt))
    cost = (anomaly_loss + 0.1 * (a_loss + panomaly_loss + n_loss + a_nloss)
            + 0.1 * result['triplet_margin'] + 0.001 * result['kl_loss']
            + 0.01 * result['distance'])
    return cost, {'att_loss': anomaly_loss, 'N_Aatt': panomaly_loss,
                  'A_loss': a_loss, 'N_loss': n_loss, 'A_Nloss': a_nloss}


if __name__ == "__main__":
    def make_case(key, B, T, dtype):
        keys = jax.random.split(key, 9)
        sig = jax.nn.sigmoid
        r = lambda kk: sig(jax.random.normal(kk, (B, T), jnp.float32)).astype(dtype)
        result = {
            'frame': r(keys[0]), 'A_att': r(keys[1]), 'N_att': r(keys[2]),
            'A_Natt': r(keys[3]), 'N_Aatt': r(keys[4]),
            'triplet_margin': jnp.abs(jax.random.normal(keys[5], (), jnp.float32)),
            'kl_loss': jnp.abs(jax.random.normal(keys[6], (), jnp.float32)),
            'distance': jnp.abs(jax.random.normal(keys[7], (), jnp.float32)),
        }
        label = (jax.random.uniform(keys[8], (B,)) > 0.5).astype(jnp.float32)
        return result, label

    def check(a, b, tol):
        assert jnp.allclose(a, b, rtol=tol, atol=tol), (float(a), float(b))

    k1, k2, k3 = jax.random.split(jax.random.PRNGKey(0), 3)

    # case 1: tiny, single grid step (B=2, T=32 -> k=3), f32 inputs.
    res, lab = make_case(k1, 2, 32, jnp.float32)
    cost, loss = ur_loss(res, lab, step=0)
    cost = jax.block_until_ready(cost)
    rc, rl = _ref_ur_loss(res, lab)
    check(cost, rc, 1e-5)
    check(loss['att_loss'], rl['att_loss'], 1e-5)
    check(loss['A_Nloss'], rl['A_Nloss'], 1e-5)

    # case 2: B-tiled "parallel" grid with a ragged last tile
    # (B=20, T=128, tile_b=8 -> 3 tiles, rows 20..23 masked).
    res, lab = make_case(k2, 20, 128, jnp.float32)
    cost, loss = ur_loss(res, lab, step=0, tile_b=8)
    cost = jax.block_until_ready(cost)
    rc, rl = _ref_ur_loss(res, lab)
    check(cost, rc, 1e-5)
    check(loss['att_loss'], rl['att_loss'], 1e-5)
    check(loss['N_loss'], rl['N_loss'], 1e-5)

    # case 3: bf16 inputs (native bf16 EUP log path on v6e/v7x, f32 on v5e).
    res, lab = make_case(k3, 4, 64, jnp.bfloat16)
    cost, loss = ur_loss(res, lab, step=0)
    cost = jax.block_until_ready(cost)
    rc, rl = _ref_ur_loss(res, lab)
    check(cost, rc, 2e-2)
    check(loss['A_Nloss'], rl['A_Nloss'], 2e-2)

    print("KERNEL_OK")
</pallas_src>

<mosaic_0001>
module attributes {stable_mosaic.version = 11 : i64} {
  func.func @_ur_loss_kernel(%arg0: i32, %arg1: memref<2x1xf32, #tpu.memory_space<vmem>>, %arg2: memref<2x32xf32, #tpu.memory_space<vmem>>, %arg3: memref<2x32xf32, #tpu.memory_space<vmem>>, %arg4: memref<2x32xf32, #tpu.memory_space<vmem>>, %arg5: memref<2x32xf32, #tpu.memory_space<vmem>>, %arg6: memref<2x32xf32, #tpu.memory_space<vmem>>, %arg7: memref<1x8x128xf32, #tpu.memory_space<vmem>>) attributes {dimension_semantics = [#tpu.dimension_semantics<parallel>], iteration_bounds = array<i64: 1>, scalar_prefetch = 0 : i64, scratch_operands = 0 : i64, tpu.core_type = #tpu.core_type<tc>, window_params = [{transform_indices = @transform_0, window_bounds = array<i64: 2, 1>}, {transform_indices = @transform_1, window_bounds = array<i64: 2, 32>}, {transform_indices = @transform_2, window_bounds = array<i64: 2, 32>}, {transform_indices = @transform_3, window_bounds = array<i64: 2, 32>}, {transform_indices = @transform_4, window_bounds = array<i64: 2, 32>}, {transform_indices = @transform_5, window_bounds = array<i64: 2, 32>}, {transform_indices = @transform_6, window_bounds = array<i64: 1, 8, 128>}]} {
    %c0 = arith.constant 0 : index
    %c0_0 = arith.constant 0 : index
    %0 = vector.load %arg4[%c0, %c0_0] : memref<2x32xf32, #tpu.memory_space<vmem>>, vector<2x32xf32>
    %1 = math.log %0 : vector<2x32xf32>
    %cst = arith.constant -1.000000e+02 : f32
    %2 = vector.broadcast %cst : f32 to vector<2x32xf32>
    %3 = arith.maximumf %1, %2 : vector<2x32xf32>
    %4 = vector.shape_cast %3 : vector<2x32xf32> to vector<1x2x32xf32>
    %cst_1 = arith.constant dense<0.000000e+00> : vector<1xf32>
    %5 = vector.multi_reduction <add>, %4, %cst_1 [1, 2] : vector<1x2x32xf32> to vector<1xf32>
    %6 = vector.shape_cast %5 : vector<1xf32> to vector<1x1x1xf32>
    %7 = vector.extract %6[0, 0, 0] : f32 from vector<1x1x1xf32>
    %cst_2 = arith.constant 0.000000e+00 : f32
    %8 = arith.subf %cst_2, %7 : f32
    %c0_3 = arith.constant 0 : index
    %c0_4 = arith.constant 0 : index
    %9 = vector.load %arg5[%c0_3, %c0_4] : memref<2x32xf32, #tpu.memory_space<vmem>>, vector<2x32xf32>
    %cst_5 = arith.constant 1.000000e+00 : f32
    %10 = vector.broadcast %cst_5 : f32 to vector<2x32xf32>
    %11 = arith.subf %10, %9 : vector<2x32xf32>
    %12 = math.log %11 : vector<2x32xf32>
    %cst_6 = arith.constant -1.000000e+02 : f32
    %13 = vector.broadcast %cst_6 : f32 to vector<2x32xf32>
    %14 = arith.maximumf %12, %13 : vector<2x32xf32>
    %15 = vector.shape_cast %14 : vector<2x32xf32> to vector<1x2x32xf32>
    %cst_7 = arith.constant dense<0.000000e+00> : vector<1xf32>
    %16 = vector.multi_reduction <add>, %15, %cst_7 [1, 2] : vector<1x2x32xf32> to vector<1xf32>
    %17 = vector.shape_cast %16 : vector<1xf32> to vector<1x1x1xf32>
    %18 = vector.extract %17[0, 0, 0] : f32 from vector<1x1x1xf32>
    %cst_8 = arith.constant 0.000000e+00 : f32
    %19 = arith.subf %cst_8, %18 : f32
    %c0_9 = arith.constant 0 : index
    %c0_10 = arith.constant 0 : index
    %20 = vector.load %arg2[%c0_9, %c0_10] : memref<2x32xf32, #tpu.memory_space<vmem>>, vector<2x32xf32>
    %c0_11 = arith.constant 0 : index
    %c0_12 = arith.constant 0 : index
    %21 = vector.load %arg3[%c0_11, %c0_12] : memref<2x32xf32, #tpu.memory_space<vmem>>, vector<2x32xf32>
    %c0_13 = arith.constant 0 : index
    %c0_14 = arith.constant 0 : index
    %22 = vector.load %arg6[%c0_13, %c0_14] : memref<2x32xf32, #tpu.memory_space<vmem>>, vector<2x32xf32>
    %cst_15 = arith.constant 1.000000e+00 : f32
    %23 = vector.broadcast %cst_15 : f32 to vector<2x32xf32>
    %24 = arith.subf %23, %22 : vector<2x32xf32>
    %25 = vector.shape_cast %20 : vector<2x32xf32> to vector<1x2x32xf32>
    %26 = vector.shape_cast %24 : vector<2x32xf32> to vector<1x2x32xf32>
    %27 = vector.shape_cast %21 : vector<2x32xf32> to vector<1x2x32xf32>
    %28 = tpu.concatenate %25, %26, %27 in 0 : vector<1x2x32xf32>, vector<1x2x32xf32>, vector<1x2x32xf32> -> vector<3x2x32xf32>
    %29 = tpu.iota {dimensions = array<i32: 2>} : vector<3x2x32xi32>
    %30 = tpu.bitcast %28 : vector<3x2x32xf32> -> vector<3x2x32xi32>
    %c-32_i32 = arith.constant -32 : i32
    %31 = vector.broadcast %c-32_i32 : i32 to vector<3x2x32xi32>
    %32 = arith.andi %30, %31 : vector<3x2x32xi32>
    %c31_i32 = arith.constant 31 : i32
    %33 = vector.broadcast %c31_i32 : i32 to vector<3x2x32xi32>
    %34 = arith.subi %33, %29 : vector<3x2x32xi32>
    %35 = arith.ori %32, %34 : vector<3x2x32xi32>
    %c-2147483648_i32 = arith.constant -2147483648 : i32
    %c0_i32 = arith.constant 0 : i32
    %cst_16 = arith.constant dense<-2147483648> : vector<3x2xi32>
    %36 = vector.multi_reduction <maxsi>, %35, %cst_16 [2] : vector<3x2x32xi32> to vector<3x2xi32>
    %37 = vector.shape_cast %36 : vector<3x2xi32> to vector<3x2x1xi32>
    %38 = vector.broadcast %37 : vector<3x2x1xi32> to vector<3x2x32xi32>
    %39 = arith.cmpi eq, %35, %38 : vector<3x2x32xi32>
    %40 = vector.broadcast %c-2147483648_i32 : i32 to vector<3x2x32xi32>
    %41 = arith.select %39, %40, %35 : vector<3x2x32xi1>, vector<3x2x32xi32>
    %c1_i32 = arith.constant 1 : i32
    %cst_17 = arith.constant dense<-2147483648> : vector<3x2xi32>
    %42 = vector.multi_reduction <maxsi>, %41, %cst_17 [2] : vector<3x2x32xi32> to vector<3x2xi32>
    %43 = vector.shape_cast %42 : vector<3x2xi32> to vector<3x2x1xi32>
    %44 = vector.broadcast %43 : vector<3x2x1xi32> to vector<3x2x32xi32>
    %45 = arith.cmpi eq, %41, %44 : vector<3x2x32xi32>
    %46 = vector.broadcast %c-2147483648_i32 : i32 to vector<3x2x32xi32>
    %47 = arith.select %45, %46, %41 : vector<3x2x32xi1>, vector<3x2x32xi32>
    %c2_i32 = arith.constant 2 : i32
    %cst_18 = arith.constant dense<-2147483648> : vector<3x2xi32>
    %48 = vector.multi_reduction <maxsi>, %47, %cst_18 [2] : vector<3x2x32xi32> to vector<3x2xi32>
    %49 = vector.shape_cast %48 : vector<3x2xi32> to vector<3x2x1xi32>
    %50 = vector.broadcast %49 : vector<3x2x1xi32> to vector<3x2x32xi32>
    %51 = arith.cmpi eq, %47, %50 : vector<3x2x32xi32>
    %52 = vector.broadcast %c-2147483648_i32 : i32 to vector<3x2x32xi32>
    %53 = arith.select %51, %52, %47 : vector<3x2x32xi1>, vector<3x2x32xi32>
    %c-2147483648_i32_19 = arith.constant -2147483648 : i32
    %54 = vector.broadcast %c-2147483648_i32_19 : i32 to vector<3x2x32xi32>
    %55 = arith.cmpi eq, %53, %54 : vector<3x2x32xi32>
    %56 = arith.extui %55 : vector<3x2x32xi1> to vector<3x2x32xi32>
    %57 = arith.sitofp %56 : vector<3x2x32xi32> to vector<3x2x32xf32>
    %58 = arith.mulf %28, %57 : vector<3x2x32xf32>
    %cst_20 = arith.constant dense<0.000000e+00> : vector<3x2xf32>
    %59 = vector.multi_reduction <add>, %58, %cst_20 [2] : vector<3x2x32xf32> to vector<3x2xf32>
    %60 = vector.shape_cast %59 : vector<3x2xf32> to vector<3x2x1xf32>
    %cst_21 = arith.constant 0.333333343 : f32
    %61 = vector.broadcast %cst_21 : f32 to vector<3x2x1xf32>
    %62 = arith.mulf %60, %61 : vector<3x2x1xf32>
    %63 = vector.extract_strided_slice %62 {offsets = [0, 0, 0], sizes = [1, 2, 1], strides = [1, 1, 1]} : vector<3x2x1xf32> to vector<1x2x1xf32>
    %64 = vector.shape_cast %63 : vector<1x2x1xf32> to vector<2x1xf32>
    %65 = vector.extract_strided_slice %62 {offsets = [1, 0, 0], sizes = [1, 2, 1], strides = [1, 1, 1]} : vector<3x2x1xf32> to vector<1x2x1xf32>
    %66 = vector.shape_cast %65 : vector<1x2x1xf32> to vector<2x1xf32>
    %67 = vector.extract_strided_slice %62 {offsets = [2, 0, 0], sizes = [1, 2, 1], strides = [1, 1, 1]} : vector<3x2x1xf32> to vector<1x2x1xf32>
    %68 = vector.shape_cast %67 : vector<1x2x1xf32> to vector<2x1xf32>
    %c0_22 = arith.constant 0 : index
    %c0_23 = arith.constant 0 : index
    %69 = vector.load %arg1[%c0_22, %c0_23] : memref<2x1xf32, #tpu.memory_space<vmem>>, vector<2x1xf32>
    %70 = math.log %64 : vector<2x1xf32>
    %cst_24 = arith.constant -1.000000e+02 : f32
    %71 = vector.broadcast %cst_24 : f32 to vector<2x1xf32>
    %72 = arith.maximumf %70, %71 : vector<2x1xf32>
    %cst_25 = arith.constant 1.000000e+00 : f32
    %73 = vector.broadcast %cst_25 : f32 to vector<2x1xf32>
    %74 = arith.subf %73, %64 : vector<2x1xf32>
    %75 = math.log %74 : vector<2x1xf32>
    %cst_26 = arith.constant -1.000000e+02 : f32
    %76 = vector.broadcast %cst_26 : f32 to vector<2x1xf32>
    %77 = arith.maximumf %75, %76 : vector<2x1xf32>
    %78 = arith.mulf %69, %72 : vector<2x1xf32>
    %cst_27 = arith.constant 1.000000e+00 : f32
    %79 = vector.broadcast %cst_27 : f32 to vector<2x1xf32>
    %80 = arith.subf %79, %69 : vector<2x1xf32>
    %81 = arith.mulf %80, %77 : vector<2x1xf32>
    %82 = arith.addf %78, %81 : vector<2x1xf32>
    %cst_28 = arith.constant 0.000000e+00 : f32
    %83 = vector.broadcast %cst_28 : f32 to vector<2x1xf32>
    %84 = arith.subf %83, %82 : vector<2x1xf32>
    %85 = vector.shape_cast %84 : vector<2x1xf32> to vector<1x2x1xf32>
    %cst_29 = arith.constant dense<0.000000e+00> : vector<1xf32>
    %86 = vector.multi_reduction <add>, %85, %cst_29 [1, 2] : vector<1x2x1xf32> to vector<1xf32>
    %87 = vector.shape_cast %86 : vector<1xf32> to vector<1x1x1xf32>
    %88 = vector.extract %87[0, 0, 0] : f32 from vector<1x1x1xf32>
    %89 = math.log %66 : vector<2x1xf32>
    %cst_30 = arith.constant -1.000000e+02 : f32
    %90 = vector.broadcast %cst_30 : f32 to vector<2x1xf32>
    %91 = arith.maximumf %89, %90 : vector<2x1xf32>
    %92 = vector.shape_cast %91 : vector<2x1xf32> to vector<1x2x1xf32>
    %cst_31 = arith.constant dense<0.000000e+00> : vector<1xf32>
    %93 = vector.multi_reduction <add>, %92, %cst_31 [1, 2] : vector<1x2x1xf32> to vector<1xf32>
    %94 = vector.shape_cast %93 : vector<1xf32> to vector<1x1x1xf32>
    %95 = vector.extract %94[0, 0, 0] : f32 from vector<1x1x1xf32>
    %cst_32 = arith.constant 0.000000e+00 : f32
    %96 = arith.subf %cst_32, %95 : f32
    %97 = math.log %68 : vector<2x1xf32>
    %cst_33 = arith.constant -1.000000e+02 : f32
    %98 = vector.broadcast %cst_33 : f32 to vector<2x1xf32>
    %99 = arith.maximumf %97, %98 : vector<2x1xf32>
    %100 = vector.shape_cast %99 : vector<2x1xf32> to vector<1x2x1xf32>
    %cst_34 = arith.constant dense<0.000000e+00> : vector<1xf32>
    %101 = vector.multi_reduction <add>, %100, %cst_34 [1, 2] : vector<1x2x1xf32> to vector<1xf32>
    %102 = vector.shape_cast %101 : vector<1xf32> to vector<1x1x1xf32>
    %103 = vector.extract %102[0, 0, 0] : f32 from vector<1x1x1xf32>
    %cst_35 = arith.constant 0.000000e+00 : f32
    %104 = arith.subf %cst_35, %103 : f32
    %105 = tpu.iota {dimensions = array<i32: 2>} : vector<1x8x128xi32>
    %106 = tpu.iota {dimensions = array<i32: 1>} : vector<1x8x128xi32>
    %c0_i32_36 = arith.constant 0 : i32
    %107 = vector.broadcast %c0_i32_36 : i32 to vector<1x8x128xi32>
    %108 = arith.cmpi eq, %106, %107 : vector<1x8x128xi32>
    %c0_i32_37 = arith.constant 0 : i32
    %109 = vector.broadcast %c0_i32_37 : i32 to vector<1x8x128xi32>
    %110 = arith.cmpi eq, %105, %109 : vector<1x8x128xi32>
    %111 = arith.andi %108, %110 : vector<1x8x128xi1>
    %cst_38 = arith.constant 0.000000e+00 : f32
    %112 = vector.broadcast %88 : f32 to vector<1x8x128xf32>
    %113 = vector.broadcast %cst_38 : f32 to vector<1x8x128xf32>
    %114 = arith.select %111, %112, %113 : vector<1x8x128xi1>, vector<1x8x128xf32>
    %c1_i32_39 = arith.constant 1 : i32
    %115 = vector.broadcast %c1_i32_39 : i32 to vector<1x8x128xi32>
    %116 = arith.cmpi eq, %105, %115 : vector<1x8x128xi32>
    %117 = arith.andi %108, %116 : vector<1x8x128xi1>
    %cst_40 = arith.constant 0.000000e+00 : f32
    %118 = vector.broadcast %96 : f32 to vector<1x8x128xf32>
    %119 = vector.broadcast %cst_40 : f32 to vector<1x8x128xf32>
    %120 = arith.select %117, %118, %119 : vector<1x8x128xi1>, vector<1x8x128xf32>
    %121 = arith.addf %114, %120 : vector<1x8x128xf32>
    %c2_i32_41 = arith.constant 2 : i32
    %122 = vector.broadcast %c2_i32_41 : i32 to vector<1x8x128xi32>
    %123 = arith.cmpi eq, %105, %122 : vector<1x8x128xi32>
    %124 = arith.andi %108, %123 : vector<1x8x128xi1>
    %cst_42 = arith.constant 0.000000e+00 : f32
    %125 = vector.broadcast %104 : f32 to vector<1x8x128xf32>
    %126 = vector.broadcast %cst_42 : f32 to vector<1x8x128xf32>
    %127 = arith.select %124, %125, %126 : vector<1x8x128xi1>, vector<1x8x128xf32>
    %128 = arith.addf %121, %127 : vector<1x8x128xf32>
    %c3_i32 = arith.constant 3 : i32
    %129 = vector.broadcast %c3_i32 : i32 to vector<1x8x128xi32>
    %130 = arith.cmpi eq, %105, %129 : vector<1x8x128xi32>
    %131 = arith.andi %108, %130 : vector<1x8x128xi1>
    %cst_43 = arith.constant 0.000000e+00 : f32
    %132 = vector.broadcast %8 : f32 to vector<1x8x128xf32>
    %133 = vector.broadcast %cst_43 : f32 to vector<1x8x128xf32>
    %134 = arith.select %131, %132, %133 : vector<1x8x128xi1>, vector<1x8x128xf32>
    %135 = arith.addf %128, %134 : vector<1x8x128xf32>
    %c4_i32 = arith.constant 4 : i32
    %136 = vector.broadcast %c4_i32 : i32 to vector<1x8x128xi32>
    %137 = arith.cmpi eq, %105, %136 : vector<1x8x128xi32>
    %138 = arith.andi %108, %137 : vector<1x8x128xi1>
    %cst_44 = arith.constant 0.000000e+00 : f32
    %139 = vector.broadcast %19 : f32 to vector<1x8x128xf32>
    %140 = vector.broadcast %cst_44 : f32 to vector<1x8x128xf32>
    %141 = arith.select %138, %139, %140 : vector<1x8x128xi1>, vector<1x8x128xf32>
    %142 = arith.addf %135, %141 : vector<1x8x128xf32>
    %c0_45 = arith.constant 0 : index
    %c0_46 = arith.constant 0 : index
    %c0_47 = arith.constant 0 : index
    %143 = vector.load %arg7[%c0_45, %c0_46, %c0_47] : memref<1x8x128xf32, #tpu.memory_space<vmem>>, vector<1x8x128xf32>
    tpu.vector_store %arg7[%c0_45, %c0_46, %c0_47], %142 {strides = array<i32>} : memref<1x8x128xf32, #tpu.memory_space<vmem>>, vector<1x8x128xf32>,
    return
  }
  func.func @transform_0(%arg0: i32) -> (i32, i32) {
    %c0_i32 = arith.constant 0 : i32
    %c0_i32_0 = arith.constant 0 : i32
    return %arg0, %c0_i32 : i32, i32
  }
  func.func @transform_1(%arg0: i32) -> (i32, i32) {
    %c0_i32 = arith.constant 0 : i32
    %c0_i32_0 = arith.constant 0 : i32
    return %arg0, %c0_i32 : i32, i32
  }
  func.func @transform_2(%arg0: i32) -> (i32, i32) {
    %c0_i32 = arith.constant 0 : i32
    %c0_i32_0 = arith.constant 0 : i32
    return %arg0, %c0_i32 : i32, i32
  }
  func.func @transform_3(%arg0: i32) -> (i32, i32) {
    %c0_i32 = arith.constant 0 : i32
    %c0_i32_0 = arith.constant 0 : i32
    return %arg0, %c0_i32 : i32, i32
  }
  func.func @transform_4(%arg0: i32) -> (i32, i32) {
    %c0_i32 = arith.constant 0 : i32
    %c0_i32_0 = arith.constant 0 : i32
    return %arg0, %c0_i32 : i32, i32
  }
  func.func @transform_5(%arg0: i32) -> (i32, i32) {
    %c0_i32 = arith.constant 0 : i32
    %c0_i32_0 = arith.constant 0 : i32
    return %arg0, %c0_i32 : i32, i32
  }
  func.func @transform_6(%arg0: i32) -> (i32, i32, i32) {
    %c0_i32 = arith.constant 0 : i32
    %c0_i32_0 = arith.constant 0 : i32
    %c0_i32_1 = arith.constant 0 : i32
    return %arg0, %c0_i32, %c0_i32_0 : i32, i32, i32
  }
}

</mosaic_0001>

<llo_original>
// kernel: tpu_custom_call.1
$region0: #{tpu_custom_call.1}
  #allocation0 [shape = 'u32[]', space=smem, size = 0x4, offset = 0x4, fixed_abs, tag = 'smem constant byte address 0x4 - core index']
  #allocation1 [shape = 'u32[144,128]{1,0:T(1,128)}', space=vmem, size = 0x12000, scoped, tag = 'internal scratch']
  %s0 = inlined_call_operand.vmem [shape: f32[2,1], index: 0, kind: input, shape index: {}]
  %s1 = inlined_call_operand.vmem [shape: f32[2,32], index: 1, kind: input, shape index: {}]
  %s2 = inlined_call_operand.vmem [shape: f32[2,32], index: 2, kind: input, shape index: {}]
  %s3 = inlined_call_operand.vmem [shape: f32[2,32], index: 3, kind: input, shape index: {}]
  %s4 = inlined_call_operand.vmem [shape: f32[2,32], index: 4, kind: input, shape index: {}]
  %s5 = inlined_call_operand.vmem [shape: f32[2,32], index: 5, kind: input, shape index: {}]
  %s6 = inlined_call_operand.hbm [shape: f32[1,8,128], index: 6, kind: output, shape index: {}]
  %s7 = sld [smem:[#allocation0]]
  $region34: #{tpu_custom_call.1} parent=0
    _
  %s9 = ssub.s32 1, %s7
  %s10 = scalar_select 0, %s9, %s7
  $region1: #{tpu_custom_call.1} parent=0
    #allocation2 [shape = 'u8[4096]{0}', space=vmem, size = 0x1000, scoped, tag = 'output window, operand 0, single buffered']
    #allocation3 [shape = 's32[1]{0}', space=sflag, size = 0x4, scoped, tag = 'scoped memory for tpu_custom_call.1']
    %11 = vsyncpa [#allocation3], 0
    // Predicated region
    $region2: #{tpu_custom_call.1} parent=1 // pred_check
      _
    $region3: #{tpu_custom_call.1} parent=1 // pred_check_branch
      %13 = sbr.rel (0) target = $region5
    $region4: #{tpu_custom_call.1} parent=1 // pred_region
      _
    $region5: #{tpu_custom_call.1} parent=1 // pred_fallthru
      _
    // Predicated region
    $region6: #{tpu_custom_call.1} parent=1 // pred_check
      _
    $region7: #{tpu_custom_call.1} parent=1 // pred_check_branch
      %15 = sbr.rel (0) target = $region9
    $region8: #{tpu_custom_call.1} parent=1 // pred_region
      _
    $region9: #{tpu_custom_call.1} parent=1 // pred_fallthru
      _
    // Predicated region
    $region10: #{tpu_custom_call.1} parent=1 // pred_check
      _
    $region11: #{tpu_custom_call.1} parent=1 // pred_check_branch
      %17 = sbr.rel (0) target = $region13
    $region12: #{tpu_custom_call.1} parent=1 // pred_region
      _
    $region13: #{tpu_custom_call.1} parent=1 // pred_fallthru
      _
    // Predicated region
    $region14: #{tpu_custom_call.1} parent=1 // pred_check
      _
    $region15: #{tpu_custom_call.1} parent=1 // pred_check_branch
      %19 = sbr.rel (0) target = $region17
    $region16: #{tpu_custom_call.1} parent=1 // pred_region
      _
    $region17: #{tpu_custom_call.1} parent=1 // pred_fallthru
      _
    // Predicated region
    $region18: #{tpu_custom_call.1} parent=1 // pred_check
      _
    $region19: #{tpu_custom_call.1} parent=1 // pred_check_branch
      %21 = sbr.rel (0) target = $region21
    $region20: #{tpu_custom_call.1} parent=1 // pred_region
      _
    $region21: #{tpu_custom_call.1} parent=1 // pred_fallthru
      _
    // Predicated region
    $region22: #{tpu_custom_call.1} parent=1 // pred_check
      _
    $region23: #{tpu_custom_call.1} parent=1 // pred_check_branch
      %23 = sbr.rel (0) target = $region25
    $region24: #{tpu_custom_call.1} parent=1 // pred_region
      _
    $region25: #{tpu_custom_call.1} parent=1 // pred_fallthru
      _
    %v24 = vld [vmem:[%s3] sm:$0x3]
    %v25 = vlog2.pop %v24
    %v26 = vmul.f32 %v25, 0.6931472
    %v27 = vmax.f32 %v26, -100.0
    %vm28 = vcmask 254976
    %v29 = vsel %vm28, %v27, 0.0
    %30 = vadd.xlane.f32.xlu0 %v29
    %v31 = vpop.xlane.xlu0 %30
    %v32 = vrot.slane %v31, 4
    %v33 = vadd.f32 %v31, %v32
    %v34 = vrot.slane %v33, 2
    %v35 = vadd.f32 %v33, %v34
    %v36 = vrot.slane %v35, 1
    %v37 = vadd.f32 %v35, %v36
    %s38 = vtos %v37
    %s39 = ssub.f32 0.0, %s38
    %v40 = vld [vmem:[%s4] sm:$0x3]
    %v41 = vsub.f32 1.0, %v40
    %v42 = vlog2.pop %v41
    %v43 = vmul.f32 %v42, 0.6931472
    %v44 = vmax.f32 %v43, -100.0
    %v45 = vsel %vm28, %v44, 0.0
    %46 = vadd.xlane.f32.xlu0 %v45
    %v47 = vpop.xlane.xlu0 %46
    %v48 = vrot.slane %v47, 4
    %v49 = vadd.f32 %v47, %v48
    %v50 = vrot.slane %v49, 2
    %v51 = vadd.f32 %v49, %v50
    %v52 = vrot.slane %v51, 1
    %v53 = vadd.f32 %v51, %v52
    %s54 = vtos %v53
    %s55 = ssub.f32 0.0, %s54
    %v56 = vld [vmem:[%s1] sm:$0x3]
    %v57 = vld [vmem:[%s2] sm:$0x3]
    %v58 = vld [vmem:[%s5] sm:$0x3]
    %v59 = vsub.f32 1.0, %v58
    %v60 = vlaneseq
    %v61 = vand.u32 %v60, 127
    %v65 = vand.u32 %v56, 4294967264
    %v66 = vand.u32 %v59, 4294967264
    %v67 = vand.u32 %v57, 4294967264
    %v68 = vsub.s32 31, %v61
    %v69 = vor.u32 %v65, %v68
    %v70 = vor.u32 %v66, %v68
    %v71 = vor.u32 %v67, %v68
    %v72 = vsel %vm28, %v69, 2147483648
    %v73 = vand.u32 %v72, 65535
    %v74 = vshra.s32 %v72, 16
    %v75 = vcvt.s32.f32 %v73
    %v76 = vcvt.s32.f32 %v74
    %77 = vmax.xlane.f32.xlu0 %v76
    %v78 = vpop.xlane.xlu0 %77
    %vm79 = vcmp.eq.f32.partialorder %v76, %v78
    %v80 = vsel %vm79, %v75, -inf
    %81 = vmax.xlane.f32.xlu0 %v80
    %v82 = vpop.xlane.xlu0 %81
    %v83 = vcvt.f32.s32 %v82
    %v84 = vcvt.f32.s32 %v78
    %v85 = vshll.u32 %v84, 16
    %v86 = vadd.s32 %v85, %v83
    %v87 = vsel %vm28, %v70, 2147483648
    %v88 = vand.u32 %v87, 65535
    %v89 = vshra.s32 %v87, 16
    %v90 = vcvt.s32.f32 %v88
    %v91 = vcvt.s32.f32 %v89
    %92 = vmax.xlane.f32.xlu0 %v91
    %v93 = vpop.xlane.xlu0 %92
    %vm94 = vcmp.eq.f32.partialorder %v91, %v93
    %v95 = vsel %vm94, %v90, -inf
    %96 = vmax.xlane.f32.xlu0 %v95
    %v97 = vpop.xlane.xlu0 %96
    %v98 = vcvt.f32.s32 %v97
    %v99 = vcvt.f32.s32 %v93
    %v100 = vshll.u32 %v99, 16
    %v101 = vadd.s32 %v100, %v98
    %v102 = vsel %vm28, %v71, 2147483648
    %v103 = vand.u32 %v102, 65535
    %v104 = vshra.s32 %v102, 16
    %v105 = vcvt.s32.f32 %v103
    %v106 = vcvt.s32.f32 %v104
    %107 = vmax.xlane.f32.xlu0 %v106
    %v108 = vpop.xlane.xlu0 %107
    %vm109 = vcmp.eq.f32.partialorder %v106, %v108
    %v110 = vsel %vm109, %v105, -inf
    %111 = vmax.xlane.f32.xlu0 %v110
    %v112 = vpop.xlane.xlu0 %111
    %v113 = vcvt.f32.s32 %v112
    %v114 = vcvt.f32.s32 %v108
    %v115 = vshll.u32 %v114, 16
    %v116 = vadd.s32 %v115, %v113
    %vm117 = vcmp.eq.s32.totalorder %v69, %v86
    %vm118 = vcmp.eq.s32.totalorder %v70, %v101
    %vm119 = vcmp.eq.s32.totalorder %v71, %v116
    %v120 = vsel %vm117, 2147483648, %v69
    %v121 = vsel %vm118, 2147483648, %v70
    %v122 = vsel %vm119, 2147483648, %v71
    %v123 = vsel %vm28, %v120, 2147483648
    %v124 = vand.u32 %v123, 65535
    %v125 = vshra.s32 %v123, 16
    %v126 = vcvt.s32.f32 %v124
    %v127 = vcvt.s32.f32 %v125
    %128 = vmax.xlane.f32.xlu0 %v127
    %v129 = vpop.xlane.xlu0 %128
    %vm130 = vcmp.eq.f32.partialorder %v127, %v129
    %v131 = vsel %vm130, %v126, -inf
    %132 = vmax.xlane.f32.xlu0 %v131
    %v133 = vpop.xlane.xlu0 %132
    %v134 = vcvt.f32.s32 %v133
    %v135 = vcvt.f32.s32 %v129
    %v136 = vshll.u32 %v135, 16
    %v137 = vadd.s32 %v136, %v134
    %v138 = vsel %vm28, %v121, 2147483648
    %v139 = vand.u32 %v138, 65535
    %v140 = vshra.s32 %v138, 16
    %v141 = vcvt.s32.f32 %v139
    %v142 = vcvt.s32.f32 %v140
    %143 = vmax.xlane.f32.xlu0 %v142
    %v144 = vpop.xlane.xlu0 %143
    %vm145 = vcmp.eq.f32.partialorder %v142, %v144
    %v146 = vsel %vm145, %v141, -inf
    %147 = vmax.xlane.f32.xlu0 %v146
    %v148 = vpop.xlane.xlu0 %147
    %v149 = vcvt.f32.s32 %v148
    %v150 = vcvt.f32.s32 %v144
    %v151 = vshll.u32 %v150, 16
    %v152 = vadd.s32 %v151, %v149
    %v153 = vsel %vm28, %v122, 2147483648
    %v154 = vand.u32 %v153, 65535
    %v155 = vshra.s32 %v153, 16
    %v156 = vcvt.s32.f32 %v154
    %v157 = vcvt.s32.f32 %v155
    %158 = vmax.xlane.f32.xlu0 %v157
    %v159 = vpop.xlane.xlu0 %158
    %vm160 = vcmp.eq.f32.partialorder %v157, %v159
    %v161 = vsel %vm160, %v156, -inf
    %162 = vmax.xlane.f32.xlu0 %v161
    %v163 = vpop.xlane.xlu0 %162
    %v164 = vcvt.f32.s32 %v163
    %v165 = vcvt.f32.s32 %v159
    %v166 = vshll.u32 %v165, 16
    %v167 = vadd.s32 %v166, %v164
    %vm168 = vcmp.eq.s32.totalorder %v120, %v137
    %vm169 = vcmp.eq.s32.totalorder %v121, %v152
    %vm170 = vcmp.eq.s32.totalorder %v122, %v167
    %v171 = vsel %vm168, 2147483648, %v120
    %v172 = vsel %vm169, 2147483648, %v121
    %v173 = vsel %vm170, 2147483648, %v122
    %v174 = vsel %vm28, %v171, 2147483648
    %v175 = vand.u32 %v174, 65535
    %v176 = vshra.s32 %v174, 16
    %v177 = vcvt.s32.f32 %v175
    %v178 = vcvt.s32.f32 %v176
    %179 = vmax.xlane.f32.xlu0 %v178
    %v180 = vpop.xlane.xlu0 %179
    %vm181 = vcmp.eq.f32.partialorder %v178, %v180
    %v182 = vsel %vm181, %v177, -inf
    %183 = vmax.xlane.f32.xlu0 %v182
    %v184 = vpop.xlane.xlu0 %183
    %v185 = vcvt.f32.s32 %v184
    %v186 = vcvt.f32.s32 %v180
    %v187 = vshll.u32 %v186, 16
    %v188 = vadd.s32 %v187, %v185
    %v189 = vsel %vm28, %v172, 2147483648
    %v190 = vand.u32 %v189, 65535
    %v191 = vshra.s32 %v189, 16
    %v192 = vcvt.s32.f32 %v190
    %v193 = vcvt.s32.f32 %v191
    %194 = vmax.xlane.f32.xlu0 %v193
    %v195 = vpop.xlane.xlu0 %194
    %vm196 = vcmp.eq.f32.partialorder %v193, %v195
    %v197 = vsel %vm196, %v192, -inf
    %198 = vmax.xlane.f32.xlu0 %v197
    %v199 = vpop.xlane.xlu0 %198
    %v200 = vcvt.f32.s32 %v199
    %v201 = vcvt.f32.s32 %v195
    %v202 = vshll.u32 %v201, 16
    %v203 = vadd.s32 %v202, %v200
    %v204 = vsel %vm28, %v173, 2147483648
    %v205 = vand.u32 %v204, 65535
    %v206 = vshra.s32 %v204, 16
    %v207 = vcvt.s32.f32 %v205
    %v208 = vcvt.s32.f32 %v206
    %209 = vmax.xlane.f32.xlu0 %v208
    %v210 = vpop.xlane.xlu0 %209
    %vm211 = vcmp.eq.f32.partialorder %v208, %v210
    %v212 = vsel %vm211, %v207, -inf
    %213 = vmax.xlane.f32.xlu0 %v212
    %v214 = vpop.xlane.xlu0 %213
    %v215 = vcvt.f32.s32 %v214
    %v216 = vcvt.f32.s32 %v210
    %v217 = vshll.u32 %v216, 16
    %v218 = vadd.s32 %v217, %v215
    %vm219 = vcmp.eq.s32.totalorder %v171, %v188
    %vm220 = vcmp.eq.s32.totalorder %v172, %v203
    %vm221 = vcmp.eq.s32.totalorder %v173, %v218
    %v222 = vsel %vm219, 2147483648, %v171
    %v223 = vsel %vm220, 2147483648, %v172
    %v224 = vsel %vm221, 2147483648, %v173
    %vm225 = vcmp.eq.s32.totalorder %v222, 2147483648
    %vm226 = vcmp.eq.s32.totalorder %v223, 2147483648
    %vm227 = vcmp.eq.s32.totalorder %v224, 2147483648
    %v228 = vsel %vm225, 1, 0
    %v229 = vsel %vm226, 1, 0
    %v230 = vsel %vm227, 1, 0
    %v231 = vcvt.s32.f32 %v228
    %v232 = vcvt.s32.f32 %v229
    %v233 = vcvt.s32.f32 %v230
    %v234 = vmul.f32 %v56, %v231
    %v235 = vmul.f32 %v59, %v232
    %v236 = vmul.f32 %v57, %v233
    %v237 = vsel %vm28, %v234, 0.0
    %238 = vadd.xlane.f32.xlu0 %v237
    %v239 = vpop.xlane.xlu0 %238
    %v240 = vsel %vm28, %v235, 0.0
    %241 = vadd.xlane.f32.xlu0 %v240
    %v242 = vpop.xlane.xlu0 %241
    %v243 = vsel %vm28, %v236, 0.0
    %244 = vadd.xlane.f32.xlu0 %v243
    %v245 = vpop.xlane.xlu0 %244
    %v246 = vmul.f32 %v239, 0.33333334
    %v247 = vmul.f32 %v242, 0.33333334
    %v248 = vmul.f32 %v245, 0.33333334
    %v249 = vld [vmem:[%s0] sm:$0x3]
    %v250 = vlog2.pop %v246
    %v251 = vmul.f32 %v250, 0.6931472
    %v252 = vmax.f32 %v251, -100.0
    %v253 = vsub.f32 1.0, %v246
    %v254 = vlog2.pop %v253
    %v255 = vmul.f32 %v254, 0.6931472
    %v256 = vmax.f32 %v255, -100.0
    %v257 = vmul.f32 %v249, %v252
    %v258 = vsub.f32 1.0, %v249
    %v259 = vmul.f32 %v258, %v256
    %v260 = vadd.f32 %v257, %v259
    %v261 = vsub.f32 0.0, %v260
    %vm262 = vcmask 1024
    %v263 = vsel %vm262, %v261, 0.0
    %264 = vadd.xlane.f32.xlu0 %v263
    %v265 = vpop.xlane.xlu0 %264
    %v266 = vrot.slane %v265, 4
    %v267 = vadd.f32 %v265, %v266
    %v268 = vrot.slane %v267, 2
    %v269 = vadd.f32 %v267, %v268
    %v270 = vrot.slane %v269, 1
    %v271 = vadd.f32 %v269, %v270
    %s272 = vtos %v271
    %v273 = vlog2.pop %v247
    %v274 = vmul.f32 %v273, 0.6931472
    %v275 = vmax.f32 %v274, -100.0
    %v276 = vsel %vm262, %v275, 0.0
    %277 = vadd.xlane.f32.xlu0 %v276
    %v278 = vpop.xlane.xlu0 %277
    %v279 = vrot.slane %v278, 4
    %v280 = vadd.f32 %v278, %v279
    %v281 = vrot.slane %v280, 2
    %v282 = vadd.f32 %v280, %v281
    %v283 = vrot.slane %v282, 1
    %v284 = vadd.f32 %v282, %v283
    %s285 = vtos %v284
    %s286 = ssub.f32 0.0, %s285
    %v287 = vlog2.pop %v248
    %v288 = vmul.f32 %v287, 0.6931472
    %v289 = vmax.f32 %v288, -100.0
    %v290 = vsel %vm262, %v289, 0.0
    %291 = vadd.xlane.f32.xlu0 %v290
    %v292 = vpop.xlane.xlu0 %291
    %v293 = vrot.slane %v292, 4
    %v294 = vadd.f32 %v292, %v293
    %v295 = vrot.slane %v294, 2
    %v296 = vadd.f32 %v294, %v295
    %v297 = vrot.slane %v296, 1
    %v298 = vadd.f32 %v296, %v297
    %s299 = vtos %v298
    %s300 = ssub.f32 0.0, %s299
    %v301 = vlaneseq
    %v302 = vshrl.u32 %v301, 7
    %vm303 = vcmp.eq.s32.totalorder %v302, 0
    %vm304 = vcmp.eq.s32.totalorder %v61, 0
    %vm305 = vmand %vm303, %vm304
    %v306 = vstv %s272
    %v307 = vsel %vm305, %v306, 0.0
    %vm308 = vcmp.eq.s32.totalorder %v61, 1
    %vm309 = vmand %vm303, %vm308
    %v310 = vstv %s286
    %v311 = vsel %vm309, %v310, 0.0
    %v312 = vadd.f32 %v307, %v311
    %vm313 = vcmp.eq.s32.totalorder %v61, 2
    %vm314 = vmand %vm303, %vm313
    %v315 = vstv %s300
    %v316 = vsel %vm314, %v315, 0.0
    %v317 = vadd.f32 %v312, %v316
    %vm318 = vcmp.eq.s32.totalorder %v61, 3
    %vm319 = vmand %vm303, %vm318
    %v320 = vstv %s39
    %v321 = vsel %vm319, %v320, 0.0
    %v322 = vadd.f32 %v317, %v321
    %vm323 = vcmp.eq.s32.totalorder %v61, 4
    %vm324 = vmand %vm303, %vm323
    %v325 = vstv %s55
    %v326 = vsel %vm324, %v325, 0.0
    %v327 = vadd.f32 %v322, %v326
    %328 = vst [vmem:[#allocation2] sm:$0xff] %v327
    // Predicated region
    $region26: #{tpu_custom_call.1} parent=1 // pred_check
      _
    $region27: #{tpu_custom_call.1} parent=1 // pred_check_branch
      %330 = sbr.rel (0) target = $region29
    $region28: #{tpu_custom_call.1} parent=1 // pred_region
      %s332 = ssub.s32 128, 128
      %333 = vsyncadd [#allocation3], %s332
      %s335 = sshll.u32 [#allocation2], 4
      %s336 = int_to_ptr.vmem [resolvable:$true] %s335
      %338 = dma.vmem_to_hbm [thread:$0]  %s336, 128, %s6, [#allocation3]
    $region29: #{tpu_custom_call.1} parent=1 // pred_fallthru
      _
    // Predicated region
    $region30: #{tpu_custom_call.1} parent=1 // pred_check
      _
    $region31: #{tpu_custom_call.1} parent=1 // pred_check_branch
      %340 = sbr.rel (0) target = $region33
    $region32: #{tpu_custom_call.1} parent=1 // pred_region
      %341 = dma.done [#allocation3], 128
    $region33: #{tpu_custom_call.1} parent=1 // pred_fallthru
      _
    %342 = vsyncpa [#allocation3], 1

</llo_original>
